<compile_context>
chip_gen: v7x
topology: tpu7x:2x2x1
jax: 0.10.0
libtpu: 0.0.40
codegen_flags: <defaults>
</compile_context>

<pallas_src>
import functools
import math

import jax
import jax.numpy as jnp
from jax import lax
from jax.experimental import pallas as pl
from jax.experimental.pallas import tpu as pltpu


# ----------------------------------------------------------------------------
# Pallas kernel: 2 banded matmuls + row-shift combine + BN affine + ReLU
# ----------------------------------------------------------------------------
def _conv_bn_relu_kernel(x_ref, w_ref, scale_ref, shift_ref, o_ref):
    # x_ref:     (BLOCK_ROWS, 2*Cin*Wpad)   compute dtype; one row per output-H
    #            position (+1 overlap row per depth slab); lanes = (parity,
    #            Cin, Wpad) of the padded input.
    # w_ref:     (2, 2*Cin*Wpad, Cout*Wout) banded conv weights (r0 = kh // 2)
    # scale_ref: (1, Cout*Wout)  f32  folded BatchNorm scale  (gamma/sqrt(var))
    # shift_ref: (1, Cout*Wout)  f32  folded BatchNorm shift
    # o_ref:     (BLOCK_ROWS, Cout*Wout)    compute dtype (lane-dense)
    x = x_ref[...]                         # fully consumed by both matmuls
    p0 = jnp.dot(x, w_ref[0], preferred_element_type=jnp.float32)
    p1 = jnp.dot(x, w_ref[1], preferred_element_type=jnp.float32)
    # Output row ho of a slab = p0[slab row ho] + p1[slab row ho+1]; we store
    # it at slab position ho+1 so only p0 has to move: shift it down one row
    # (np.roll semantics: rolled[r] = p0[r-1]).  The wrapped/garbage rows land
    # on slab position 0, which the wrapper slices away.
    p0s = pltpu.roll(p0, 1, axis=0)
    y = (p0s + p1) * scale_ref[...] + shift_ref[...]        # f32 epilogue
    o_ref[...] = jnp.maximum(y, 0.0).astype(o_ref.dtype)


# ----------------------------------------------------------------------------
# Wrapper: conv_devide_H forward.
# ----------------------------------------------------------------------------
@functools.partial(jax.jit, static_argnames=("compute_dtype",))
def conv_devide_h_forward(x_ncdhw, weight, bn_gamma, bn_beta, bn_mean, bn_var,
                          eps=1e-5, compute_dtype=jnp.bfloat16):
    """x_ncdhw: (N, Cin, D, H, W); weight: (Cout, Cin, 1, 4, KW) (PyTorch).

    Returns (N, Cout, D, Hout, Wout) in compute_dtype.
    """
    N, Cin, D, H, W = x_ncdhw.shape
    Cout, Cin_w, KD, KH, KW = weight.shape
    assert KD == 1 and KH == 4 and Cin_w == Cin
    sh, ph, pw = 2, 1, 1                       # module-fixed stride / padding

    Hout = (H + 2 * ph - KH) // sh + 1
    Wout = (W + 2 * pw - KW) + 1
    Wpad = W + 2 * pw
    ND = N * D
    lanes = 2 * Cin * Wpad                     # (parity, Cin, Wpad)
    OW = Cout * Wout                           # output lanes, (Cout, Wout)
    itemsize = jnp.dtype(compute_dtype).itemsize

    # ---- tile-size / grid selection (budget the TOTAL per-step VMEM) --------
    slab_rows = Hout + 1                                   # rows per depth slab
    per_slab_io = slab_rows * (lanes + OW) * itemsize      # input + output
    per_slab_int = slab_rows * OW * 4 * 3                  # p0, p1, p0s (f32)
    per_slab = 2 * per_slab_io + per_slab_int              # x2 double buffering
    budget = 12 << 20

    tb_unit = 8 // math.gcd(slab_rows, 8)      # slabs per sublane-aligned unit
    slab_rows_p = slab_rows
    if tb_unit * per_slab > budget:
        # Huge slabs: pad each slab to a multiple of 8 rows so tb can drop to 1.
        slab_rows_p = ((slab_rows + 7) // 8) * 8
        tb_unit = 1
        per_slab = per_slab * slab_rows_p // slab_rows

    w_bytes = 2 * lanes * OW * itemsize
    cap_units = max(1, (budget - 2 * w_bytes) // max(per_slab * tb_unit, 1))
    nd_pad = pl.cdiv(ND, tb_unit) * tb_unit
    n_units = nd_pad // tb_unit
    # Prefer >= 2 grid steps (v7x: 2 TensorCores share the "parallel" axis),
    # bounded above by the VMEM budget.
    units_per_block = max(1, min(cap_units, pl.cdiv(n_units, 4)))
    tb = units_per_block * tb_unit
    num_blocks = pl.cdiv(nd_pad, tb)
    block_rows = tb * slab_rows_p              # always a multiple of 8
    rows_total = nd_pad * slab_rows_p

    # ---- input rearrangement: one fused XLA pass (W stays the minor dim) ----
    x = x_ncdhw.astype(compute_dtype)
    x = jnp.transpose(x, (0, 2, 3, 1, 4))                      # (N, D, H, Cin, W)
    x = jnp.pad(x, ((0, 0), (0, 0), (ph, ph), (0, 0), (pw, pw)))
    Hrows = 2 * slab_rows
    x = x[:, :, :Hrows]                                        # rows the conv reads
    x = x.reshape(ND, slab_rows, lanes)
    if nd_pad != ND or slab_rows_p != slab_rows:
        x = jnp.pad(x, ((0, nd_pad - ND), (0, slab_rows_p - slab_rows), (0, 0)))
    x_flat = x.reshape(rows_total, lanes)

    # ---- BatchNorm (inference) folded into a per-lane affine ----------------
    scale = (bn_gamma / jnp.sqrt(bn_var + eps)).astype(jnp.float32)   # (Cout,)
    shift = (bn_beta - bn_mean * scale).astype(jnp.float32)
    scale_row = jnp.repeat(scale, Wout).reshape(1, OW)         # (Cout, Wout) order
    shift_row = jnp.repeat(shift, Wout).reshape(1, OW)

    # ---- banded conv weights (tiny, wrapper-side) ----------------------------
    # Wband[r0][p*Cin*Wpad + ci*Wpad + wi, co*Wout + wo]
    #   = w[co, ci, 0, 2*r0 + p, wi - wo]   for 0 <= wi - wo < KW, else 0.
    # BN scale is applied in the f32 epilogue (kept out of the bf16 weights).
    w2 = weight[:, :, 0].astype(jnp.float32)                   # (Cout, Cin, KH, KW)
    wi_idx = jnp.arange(Wpad)[:, None]
    wo_idx = jnp.arange(Wout)[None, :]
    bands = []
    for r0 in range(2):
        parity_blocks = []
        for p in range(2):
            kh = 2 * r0 + p
            blk = jnp.zeros((Cin, Wpad, Cout, Wout), jnp.float32)
            for kw in range(KW):
                sel = (wi_idx == wo_idx + kw).astype(jnp.float32)   # (Wpad, Wout)
                blk = blk + jnp.einsum("oc,wv->cwov", w2[:, :, kh, kw], sel)
            parity_blocks.append(blk.reshape(Cin * Wpad, OW))
        bands.append(jnp.concatenate(parity_blocks, axis=0))
    wband = jnp.stack(bands, axis=0).astype(compute_dtype)     # (2, lanes, OW)

    cost = pl.CostEstimate(
        flops=4 * rows_total * lanes * OW,                     # 2 matmuls
        transcendentals=0,
        bytes_accessed=(rows_total * (lanes + OW) * itemsize
                        + 2 * lanes * OW * itemsize + 2 * OW * 4),
    )

    out2d = pl.pallas_call(
        _conv_bn_relu_kernel,
        out_shape=jax.ShapeDtypeStruct((rows_total, OW), compute_dtype),
        grid=(num_blocks,),
        in_specs=[
            pl.BlockSpec((block_rows, lanes), lambda i: (i, 0)),      # input rows
            pl.BlockSpec((2, lanes, OW), lambda i: (0, 0, 0)),        # resident weights
            pl.BlockSpec((1, OW), lambda i: (0, 0)),                  # BN scale
            pl.BlockSpec((1, OW), lambda i: (0, 0)),                  # BN shift
        ],
        out_specs=pl.BlockSpec((block_rows, OW), lambda i: (i, 0)),   # lane-dense
        compiler_params=pltpu.CompilerParams(
            dimension_semantics=("parallel",),
            vmem_limit_bytes=32 * 1024 * 1024,
        ),
        cost_estimate=cost,
    )(x_flat, wband, scale_row, shift_row)

    # (rows_total, Cout*Wout) -> (N, Cout, D, Hout, Wout).  Valid rows sit at
    # slab positions 1..Hout (position 0 absorbed the rolled garbage row); the
    # slice fuses into the interface transpose below.
    out = out2d.reshape(nd_pad, slab_rows_p, Cout, Wout)[:ND, 1:Hout + 1]
    out = out.reshape(N, D, Hout, Cout, Wout)
    return jnp.transpose(out, (0, 3, 1, 2, 4))


# ----------------------------------------------------------------------------
# Pure-JAX reference (lax conv + BN + ReLU) for the sanity check.
# ----------------------------------------------------------------------------
def reference_forward(x_ncdhw, weight, bn_gamma, bn_beta, bn_mean, bn_var,
                      eps=1e-5):
    y = lax.conv_general_dilated(
        x_ncdhw.astype(jnp.float32),
        weight.astype(jnp.float32),
        window_strides=(1, 2, 1),
        padding=((0, 0), (1, 1), (1, 1)),
        dimension_numbers=("NCDHW", "OIDHW", "NCDHW"),
    )
    scale = (bn_gamma / jnp.sqrt(bn_var + eps)).reshape(1, -1, 1, 1, 1)
    shift = (bn_beta - bn_mean * bn_gamma / jnp.sqrt(bn_var + eps)).reshape(
        1, -1, 1, 1, 1)
    return jnp.maximum(y * scale + shift, 0.0)


if __name__ == "__main__":
    key = jax.random.PRNGKey(0)
    N, Cin, Cout = 2, 4, 8
    D, H, W = 3, 16, 16
    KH, KW = 4, 3

    k_x, k_w = jax.random.split(key)
    x = jax.random.normal(k_x, (N, Cin, D, H, W), dtype=jnp.float32)
    weight = 0.1 * jax.random.normal(k_w, (Cout, Cin, 1, KH, KW),
                                     dtype=jnp.float32)

    # Deterministic BatchNorm3d parameters / running stats (inference mode).
    bn_gamma = 1.0 + 0.01 * jnp.arange(Cout, dtype=jnp.float32)
    bn_beta = 0.02 * jnp.arange(Cout, dtype=jnp.float32)
    bn_mean = 0.05 * jnp.arange(Cout, dtype=jnp.float32)
    bn_var = 1.0 + 0.1 * jnp.arange(Cout, dtype=jnp.float32)

    ref = jax.block_until_ready(
        reference_forward(x, weight, bn_gamma, bn_beta, bn_mean, bn_var))

    # f32 compute path: tight tolerance.
    out_f32 = jax.block_until_ready(
        conv_devide_h_forward(x, weight, bn_gamma, bn_beta, bn_mean, bn_var,
                              compute_dtype=jnp.float32))
    assert out_f32.shape == (N, Cout, D, H // 2, W), out_f32.shape
    assert jnp.allclose(out_f32, ref, atol=1e-4, rtol=1e-4), (
        float(jnp.max(jnp.abs(out_f32 - ref))))

    # bf16 compute path (default): bf16 operands + bf16 output store, f32
    # accumulation/epilogue -> loosened tolerance.
    out_bf16 = jax.block_until_ready(
        conv_devide_h_forward(x, weight, bn_gamma, bn_beta, bn_mean, bn_var,
                              compute_dtype=jnp.bfloat16))
    assert out_bf16.shape == (N, Cout, D, H // 2, W), out_bf16.shape
    assert jnp.allclose(out_bf16.astype(jnp.float32), ref,
                        atol=3e-2, rtol=5e-2), (
        float(jnp.max(jnp.abs(out_bf16.astype(jnp.float32) - ref))))

    print("KERNEL_OK")
</pallas_src>

<mosaic_0001>
module attributes {stable_mosaic.version = 11 : i64} {
  func.func @_conv_bn_relu_kernel(%arg0: i32, %arg1: memref<72x144xf32, #tpu.memory_space<vmem>>, %arg2: memref<2x144x128xf32, #tpu.memory_space<vmem>>, %arg3: memref<1x128xf32, #tpu.memory_space<vmem>>, %arg4: memref<1x128xf32, #tpu.memory_space<vmem>>, %arg5: memref<72x128xf32, #tpu.memory_space<vmem>>) attributes {dimension_semantics = [#tpu.dimension_semantics<parallel>], iteration_bounds = array<i64: 1>, scalar_prefetch = 0 : i64, scratch_operands = 0 : i64, tpu.core_type = #tpu.core_type<tc>, window_params = [{transform_indices = @transform_0, window_bounds = array<i64: 72, 144>}, {pipeline_mode = #tpu.pipeline_mode<synchronous>, transform_indices = @transform_1, window_bounds = array<i64: 2, 144, 128>}, {pipeline_mode = #tpu.pipeline_mode<synchronous>, transform_indices = @transform_2, window_bounds = array<i64: 1, 128>}, {pipeline_mode = #tpu.pipeline_mode<synchronous>, transform_indices = @transform_3, window_bounds = array<i64: 1, 128>}, {transform_indices = @transform_4, window_bounds = array<i64: 72, 128>}]} {
    %c0 = arith.constant 0 : index
    %c0_0 = arith.constant 0 : index
    %0 = vector.load %arg1[%c0, %c0_0] : memref<72x144xf32, #tpu.memory_space<vmem>>, vector<72x144xf32>
    %c0_1 = arith.constant 0 : index
    %c0_2 = arith.constant 0 : index
    %c0_3 = arith.constant 0 : index
    %1 = vector.load %arg2[%c0_1, %c0_2, %c0_3] : memref<2x144x128xf32, #tpu.memory_space<vmem>>, vector<1x144x128xf32>
    %2 = vector.shape_cast %1 : vector<1x144x128xf32> to vector<144x128xf32>
    %cst = arith.constant dense<0.000000e+00> : vector<72x128xf32>
    %3 = tpu.matmul %0, %2, %cst {dimension_numbers = #tpu.dot_dimension_numbers<[1], [0], [0], [1], [0, 0, 1, 1], [], []>} : vector<72x144xf32>, vector<144x128xf32>, vector<72x128xf32> -> vector<72x128xf32>
    %c1 = arith.constant 1 : index
    %c0_4 = arith.constant 0 : index
    %c0_5 = arith.constant 0 : index
    %4 = vector.load %arg2[%c1, %c0_4, %c0_5] : memref<2x144x128xf32, #tpu.memory_space<vmem>>, vector<1x144x128xf32>
    %5 = vector.shape_cast %4 : vector<1x144x128xf32> to vector<144x128xf32>
    %cst_6 = arith.constant dense<0.000000e+00> : vector<72x128xf32>
    %6 = tpu.matmul %0, %5, %cst_6 {dimension_numbers = #tpu.dot_dimension_numbers<[1], [0], [0], [1], [0, 0, 1, 1], [], []>} : vector<72x144xf32>, vector<144x128xf32>, vector<72x128xf32> -> vector<72x128xf32>
    %c1_i32 = arith.constant 1 : i32
    %7 = tpu.dynamic_rotate %3 by %c1_i32 dim 0 : vector<72x128xf32>, i32 -> vector<72x128xf32>
    %8 = arith.addf %7, %6 : vector<72x128xf32>
    %c0_7 = arith.constant 0 : index
    %c0_8 = arith.constant 0 : index
    %9 = vector.load %arg3[%c0_7, %c0_8] : memref<1x128xf32, #tpu.memory_space<vmem>>, vector<1x128xf32>
    %10 = vector.broadcast %9 : vector<1x128xf32> to vector<72x128xf32>
    %11 = arith.mulf %8, %10 : vector<72x128xf32>
    %c0_9 = arith.constant 0 : index
    %c0_10 = arith.constant 0 : index
    %12 = vector.load %arg4[%c0_9, %c0_10] : memref<1x128xf32, #tpu.memory_space<vmem>>, vector<1x128xf32>
    %13 = vector.broadcast %12 : vector<1x128xf32> to vector<72x128xf32>
    %14 = arith.addf %11, %13 : vector<72x128xf32>
    %cst_11 = arith.constant 0.000000e+00 : f32
    %15 = vector.broadcast %cst_11 : f32 to vector<72x128xf32>
    %16 = arith.maximumf %14, %15 : vector<72x128xf32>
    %c0_12 = arith.constant 0 : index
    %c0_13 = arith.constant 0 : index
    %17 = vector.load %arg5[%c0_12, %c0_13] : memref<72x128xf32, #tpu.memory_space<vmem>>, vector<72x128xf32>
    tpu.vector_store %arg5[%c0_12, %c0_13], %16 {strides = array<i32>} : memref<72x128xf32, #tpu.memory_space<vmem>>, vector<72x128xf32>,
    return
  }
  func.func @transform_0(%arg0: i32) -> (i32, i32) {
    %c0_i32 = arith.constant 0 : i32
    %c0_i32_0 = arith.constant 0 : i32
    return %arg0, %c0_i32 : i32, i32
  }
  func.func @transform_1(%arg0: i32) -> (i32, i32, i32) {
    %c0_i32 = arith.constant 0 : i32
    %c0_i32_0 = arith.constant 0 : i32
    %c0_i32_1 = arith.constant 0 : i32
    %c0_i32_2 = arith.constant 0 : i32
    return %c0_i32, %c0_i32_0, %c0_i32_1 : i32, i32, i32
  }
  func.func @transform_2(%arg0: i32) -> (i32, i32) {
    %c0_i32 = arith.constant 0 : i32
    %c0_i32_0 = arith.constant 0 : i32
    %c0_i32_1 = arith.constant 0 : i32
    return %c0_i32, %c0_i32_0 : i32, i32
  }
  func.func @transform_3(%arg0: i32) -> (i32, i32) {
    %c0_i32 = arith.constant 0 : i32
    %c0_i32_0 = arith.constant 0 : i32
    %c0_i32_1 = arith.constant 0 : i32
    return %c0_i32, %c0_i32_0 : i32, i32
  }
  func.func @transform_4(%arg0: i32) -> (i32, i32) {
    %c0_i32 = arith.constant 0 : i32
    %c0_i32_0 = arith.constant 0 : i32
    return %arg0, %c0_i32 : i32, i32
  }
}

</mosaic_0001>

<llo_original>
// kernel: conv_devide_h_forward.1
$region0: #{conv_devide_h_forward.1}
  #allocation0 [shape = 'u32[]', space=smem, size = 0x4, offset = 0x4, fixed_abs, tag = 'smem constant byte address 0x4 - core index']
  #allocation1 [shape = 'u32[144,128]{1,0:T(1,128)}', space=vmem, size = 0x12000, scoped, tag = 'internal scratch']
  %s0 = inlined_call_operand.vmem [shape: f32[72,144], index: 0, kind: input, shape index: {}]
  %s1 = inlined_call_operand.vmem [shape: f32[2,144,128], index: 1, kind: input, shape index: {}]
  %s2 = inlined_call_operand.vmem [shape: f32[1,128], index: 2, kind: input, shape index: {}]
  %s3 = inlined_call_operand.vmem [shape: f32[1,128], index: 3, kind: input, shape index: {}]
  %s4 = inlined_call_operand.vmem [shape: f32[72,128], index: 4, kind: output, shape index: {}]
  %s5 = sld [smem:[#allocation0]]
  $region26: #{conv_devide_h_forward.1} parent=0
    _
  %s7 = ssub.s32 1, %s5
  %s8 = scalar_select 0, %s7, %s5
  // Predicated region
  $region2: #{conv_devide_h_forward.1} parent=0 // pred_check
    _
  $region3: #{conv_devide_h_forward.1} parent=0 // pred_check_branch
    %10 = sbr.rel (0) target = $region5
  $region4: #{conv_devide_h_forward.1} parent=0 // pred_region
    _
  $region5: #{conv_devide_h_forward.1} parent=0 // pred_fallthru
    _
  // Predicated region
  $region6: #{conv_devide_h_forward.1} parent=0 // pred_check
    _
  $region7: #{conv_devide_h_forward.1} parent=0 // pred_check_branch
    %12 = sbr.rel (0) target = $region9
  $region8: #{conv_devide_h_forward.1} parent=0 // pred_region
    _
  $region9: #{conv_devide_h_forward.1} parent=0 // pred_fallthru
    _
  // Predicated region
  $region10: #{conv_devide_h_forward.1} parent=0 // pred_check
    _
  $region11: #{conv_devide_h_forward.1} parent=0 // pred_check_branch
    %14 = sbr.rel (0) target = $region13
  $region12: #{conv_devide_h_forward.1} parent=0 // pred_region
    _
  $region13: #{conv_devide_h_forward.1} parent=0 // pred_fallthru
    _
  // Predicated region
  $region14: #{conv_devide_h_forward.1} parent=0 // pred_check
    _
  $region15: #{conv_devide_h_forward.1} parent=0 // pred_check_branch
    %16 = sbr.rel (0) target = $region17
  $region16: #{conv_devide_h_forward.1} parent=0 // pred_region
    _
  $region17: #{conv_devide_h_forward.1} parent=0 // pred_fallthru
    _
  %v17 = vld [vmem:[%s0] sm:$0xff]
  %v18 = vld [vmem:[%s0 + $0x8] sm:$0xff]
  %v19 = vld [vmem:[%s0 + $0x10] sm:$0xff]
  %v20 = vld [vmem:[%s0 + $0x18] sm:$0xff]
  %v21 = vld [vmem:[%s0 + $0x20] sm:$0xff]
  %v22 = vld [vmem:[%s0 + $0x28] sm:$0xff]
  %v23 = vld [vmem:[%s0 + $0x30] sm:$0xff]
  %v24 = vld [vmem:[%s0 + $0x38] sm:$0xff]
  %v25 = vld [vmem:[%s0 + $0x40] sm:$0xff]
  %v26 = vld [vmem:[%s0 + $0x48] sm:$0xff]
  %v27 = vld [vmem:[%s0 + $0x50] sm:$0xff]
  %v28 = vld [vmem:[%s0 + $0x58] sm:$0xff]
  %v29 = vld [vmem:[%s0 + $0x60] sm:$0xff]
  %v30 = vld [vmem:[%s0 + $0x68] sm:$0xff]
  %v31 = vld [vmem:[%s0 + $0x70] sm:$0xff]
  %v32 = vld [vmem:[%s0 + $0x78] sm:$0xff]
  %v33 = vld [vmem:[%s0 + $0x80] sm:$0xff]
  %v34 = vld [vmem:[%s0 + $0x88] sm:$0xff]
  %v35 = vld [vmem:[%s1] sm:$0xff]
  %v36 = vld [vmem:[%s1 + $0x8] sm:$0xff]
  %v37 = vld [vmem:[%s1 + $0x10] sm:$0xff]
  %v38 = vld [vmem:[%s1 + $0x18] sm:$0xff]
  %v39 = vld [vmem:[%s1 + $0x20] sm:$0xff]
  %v40 = vld [vmem:[%s1 + $0x28] sm:$0xff]
  %v41 = vld [vmem:[%s1 + $0x30] sm:$0xff]
  %v42 = vld [vmem:[%s1 + $0x38] sm:$0xff]
  %v43 = vld [vmem:[%s1 + $0x40] sm:$0xff]
  %v44 = vld [vmem:[%s1 + $0x48] sm:$0xff]
  %v45 = vld [vmem:[%s1 + $0x50] sm:$0xff]
  %v46 = vld [vmem:[%s1 + $0x58] sm:$0xff]
  %v47 = vld [vmem:[%s1 + $0x60] sm:$0xff]
  %v48 = vld [vmem:[%s1 + $0x68] sm:$0xff]
  %v49 = vld [vmem:[%s1 + $0x70] sm:$0xff]
  %v50 = vld [vmem:[%s1 + $0x78] sm:$0xff]
  %v51 = vld [vmem:[%s1 + $0x80] sm:$0xff]
  %v52 = vld [vmem:[%s1 + $0x88] sm:$0xff]
  %vm53 = vcmask 130048
  %v55 = vsel %vm53, %v18, 0
  %v58 = vsel %vm53, %v20, 0
  %v61 = vsel %vm53, %v22, 0
  %v64 = vsel %vm53, %v24, 0
  %v67 = vsel %vm53, %v26, 0
  %v70 = vsel %vm53, %v28, 0
  %v73 = vsel %vm53, %v30, 0
  %v76 = vsel %vm53, %v32, 0
  %v79 = vsel %vm53, %v34, 0
  %81 = vmatprep.subr.mxu0 0.0
  %82 = vmatpush1.msra.mxu0 %v35
  %83 = vmatprep.subr.mxu0 0.0
  %84 = vmatpush1.msra.mxu0 %v36
  %85 = vmatprep.subr.mxu0 0.0
  %86 = vmatpush1.msra.mxu0 %v37
  %87 = vmatprep.subr.mxu0 0.0
  %88 = vmatpush1.msra.mxu0 %v38
  %89 = vmatprep.subr.mxu0 0.0
  %90 = vmatpush1.msra.mxu0 %v39
  %91 = vmatprep.subr.mxu0 0.0
  %92 = vmatpush1.msra.mxu0 %v40
  %93 = vmatprep.subr.mxu0 0.0
  %94 = vmatpush1.msra.mxu0 %v41
  %95 = vmatprep.subr.mxu0 0.0
  %96 = vmatpush1.msra.mxu0 %v42
  %97 = vmatprep.subr.mxu0 0.0
  %98 = vmatpush1.msra.mxu0 %v43
  %99 = vmatprep.subr.mxu0 0.0
  %100 = vmatpush1.msra.mxu0 %v44
  %101 = vmatprep.subr.mxu0 0.0
  %102 = vmatpush1.msra.mxu0 %v45
  %103 = vmatprep.subr.mxu0 0.0
  %104 = vmatpush1.msra.mxu0 %v46
  %105 = vmatprep.subr.mxu0 0.0
  %106 = vmatpush1.msra.mxu0 %v47
  %107 = vmatprep.subr.mxu0 0.0
  %108 = vmatpush1.msra.mxu0 %v48
  %109 = vmatprep.subr.mxu0 0.0
  %110 = vmatpush1.msra.mxu0 %v49
  %111 = vmatprep.subr.mxu0 0.0
  %112 = vmatpush1.msra.mxu0 %v50
  %113 = vmatprep.subr.mxu0 0.0
  %114 = vmatpush1.msra.mxu0 %v51
  %115 = vmatprep.subr.mxu0 0.0
  %116 = vmatpush1.msra.mxu0 %v52
  %117 = vmatprep.subr.mxu0 0.0
  %118 = vmatpush1.msra.mxu0 0.0
  %119 = vmatprep.subr.mxu0 0.0
  %120 = vmatpush1.msra.mxu0 0.0
  %121 = vmatprep.subr.mxu0 0.0
  %122 = vmatpush1.msra.mxu0 0.0
  %123 = vmatprep.subr.mxu0 0.0
  %124 = vmatpush1.msra.mxu0 0.0
  %125 = vmatprep.subr.mxu0 0.0
  %126 = vmatpush1.msra.mxu0 0.0
  %127 = vmatprep.subr.mxu0 0.0
  %128 = vmatpush1.msra.mxu0 0.0
  %129 = vmatprep.subr.mxu0 0.0
  %130 = vmatpush1.msra.mxu0 0.0
  %131 = vmatprep.subr.mxu0 0.0
  %132 = vmatpush1.msra.mxu0 0.0
  %133 = vmatprep.subr.mxu0 0.0
  %134 = vmatpush1.msra.mxu0 0.0
  %135 = vmatprep.subr.mxu0 0.0
  %136 = vmatpush1.msra.mxu0 0.0
  %137 = vmatprep.subr.mxu0 0.0
  %138 = vmatpush1.msra.mxu0 0.0
  %139 = vmatprep.subr.mxu0 0.0
  %140 = vmatpush1.msra.mxu0 0.0
  %141 = vmatprep.subr.mxu0 0.0
  %142 = vmatpush1.msra.mxu0 0.0
  %143 = vmatprep.subr.mxu0 0.0
  %144 = vmatpush1.msra.mxu0 0.0
  %145 = vmatprep.mubr.f32.mxu0 %v55
  %146 = vmatmul.mubr.f32.gmra.mrb[0].mxu0 %v17
  %v147 = vpop.f32.mrb[0].mxu0
  %v148 = vadd.f32 0.0, %v147
  %v149 = vpop.f32.mrb[0].mxu0
  %150 = vmatprep.mubr.f32.mxu0 %v58
  %151 = vmatmul.mubr.f32.gmra.mrb[0].mxu0 %v19
  %v152 = vpop.f32.mrb[0].mxu0
  %v153 = vadd.f32 0.0, %v152
  %v154 = vpop.f32.mrb[0].mxu0
  %155 = vmatprep.mubr.f32.mxu0 %v61
  %156 = vmatmul.mubr.f32.gmra.mrb[0].mxu0 %v21
  %v157 = vpop.f32.mrb[0].mxu0
  %v158 = vadd.f32 0.0, %v157
  %v159 = vpop.f32.mrb[0].mxu0
  %160 = vmatprep.mubr.f32.mxu0 %v64
  %161 = vmatmul.mubr.f32.gmra.mrb[0].mxu0 %v23
  %v162 = vpop.f32.mrb[0].mxu0
  %v163 = vadd.f32 0.0, %v162
  %v164 = vpop.f32.mrb[0].mxu0
  %165 = vmatprep.mubr.f32.mxu0 %v67
  %166 = vmatmul.mubr.f32.gmra.mrb[0].mxu0 %v25
  %v167 = vpop.f32.mrb[0].mxu0
  %v168 = vadd.f32 0.0, %v167
  %v169 = vpop.f32.mrb[0].mxu0
  %170 = vmatprep.mubr.f32.mxu0 %v70
  %171 = vmatmul.mubr.f32.gmra.mrb[0].mxu0 %v27
  %v172 = vpop.f32.mrb[0].mxu0
  %v173 = vadd.f32 0.0, %v172
  %v174 = vpop.f32.mrb[0].mxu0
  %175 = vmatprep.mubr.f32.mxu0 %v73
  %176 = vmatmul.mubr.f32.gmra.mrb[0].mxu0 %v29
  %v177 = vpop.f32.mrb[0].mxu0
  %v178 = vadd.f32 0.0, %v177
  %v179 = vpop.f32.mrb[0].mxu0
  %180 = vmatprep.mubr.f32.mxu0 %v76
  %181 = vmatmul.mubr.f32.gmra.mrb[0].mxu0 %v31
  %v182 = vpop.f32.mrb[0].mxu0
  %v183 = vadd.f32 0.0, %v182
  %v184 = vpop.f32.mrb[0].mxu0
  %185 = vmatprep.mubr.f32.mxu0 %v79
  %186 = vmatmul.mubr.f32.gmra.mrb[0].mxu0 %v33
  %v187 = vpop.f32.mrb[0].mxu0
  %v188 = vadd.f32 0.0, %v187
  %v189 = vpop.f32.mrb[0].mxu0
  %190 = vdwg.mxu0
  %s191 = scalar_lea.vmem %s1, 144
  %v192 = vld [vmem:[%s191] sm:$0xff]
  %v193 = vld [vmem:[%s191 + $0x8] sm:$0xff]
  %v194 = vld [vmem:[%s191 + $0x10] sm:$0xff]
  %v195 = vld [vmem:[%s191 + $0x18] sm:$0xff]
  %v196 = vld [vmem:[%s191 + $0x20] sm:$0xff]
  %v197 = vld [vmem:[%s191 + $0x28] sm:$0xff]
  %v198 = vld [vmem:[%s191 + $0x30] sm:$0xff]
  %v199 = vld [vmem:[%s191 + $0x38] sm:$0xff]
  %v200 = vld [vmem:[%s191 + $0x40] sm:$0xff]
  %v201 = vld [vmem:[%s191 + $0x48] sm:$0xff]
  %v202 = vld [vmem:[%s191 + $0x50] sm:$0xff]
  %v203 = vld [vmem:[%s191 + $0x58] sm:$0xff]
  %v204 = vld [vmem:[%s191 + $0x60] sm:$0xff]
  %v205 = vld [vmem:[%s191 + $0x68] sm:$0xff]
  %v206 = vld [vmem:[%s191 + $0x70] sm:$0xff]
  %v207 = vld [vmem:[%s191 + $0x78] sm:$0xff]
  %v208 = vld [vmem:[%s191 + $0x80] sm:$0xff]
  %v209 = vld [vmem:[%s191 + $0x88] sm:$0xff]
  %210 = vmatprep.subr.mxu0 0.0
  %211 = vmatpush1.msra.mxu0 %v192
  %212 = vmatprep.subr.mxu0 0.0
  %213 = vmatpush1.msra.mxu0 %v193
  %214 = vmatprep.subr.mxu0 0.0
  %215 = vmatpush1.msra.mxu0 %v194
  %216 = vmatprep.subr.mxu0 0.0
  %217 = vmatpush1.msra.mxu0 %v195
  %218 = vmatprep.subr.mxu0 0.0
  %219 = vmatpush1.msra.mxu0 %v196
  %220 = vmatprep.subr.mxu0 0.0
  %221 = vmatpush1.msra.mxu0 %v197
  %222 = vmatprep.subr.mxu0 0.0
  %223 = vmatpush1.msra.mxu0 %v198
  %224 = vmatprep.subr.mxu0 0.0
  %225 = vmatpush1.msra.mxu0 %v199
  %226 = vmatprep.subr.mxu0 0.0
  %227 = vmatpush1.msra.mxu0 %v200
  %228 = vmatprep.subr.mxu0 0.0
  %229 = vmatpush1.msra.mxu0 %v201
  %230 = vmatprep.subr.mxu0 0.0
  %231 = vmatpush1.msra.mxu0 %v202
  %232 = vmatprep.subr.mxu0 0.0
  %233 = vmatpush1.msra.mxu0 %v203
  %234 = vmatprep.subr.mxu0 0.0
  %235 = vmatpush1.msra.mxu0 %v204
  %236 = vmatprep.subr.mxu0 0.0
  %237 = vmatpush1.msra.mxu0 %v205
  %238 = vmatprep.subr.mxu0 0.0
  %239 = vmatpush1.msra.mxu0 %v206
  %240 = vmatprep.subr.mxu0 0.0
  %241 = vmatpush1.msra.mxu0 %v207
  %242 = vmatprep.subr.mxu0 0.0
  %243 = vmatpush1.msra.mxu0 %v208
  %244 = vmatprep.subr.mxu0 0.0
  %245 = vmatpush1.msra.mxu0 %v209
  %246 = vmatprep.subr.mxu0 0.0
  %247 = vmatpush1.msra.mxu0 0.0
  %248 = vmatprep.subr.mxu0 0.0
  %249 = vmatpush1.msra.mxu0 0.0
  %250 = vmatprep.subr.mxu0 0.0
  %251 = vmatpush1.msra.mxu0 0.0
  %252 = vmatprep.subr.mxu0 0.0
  %253 = vmatpush1.msra.mxu0 0.0
  %254 = vmatprep.subr.mxu0 0.0
  %255 = vmatpush1.msra.mxu0 0.0
  %256 = vmatprep.subr.mxu0 0.0
  %257 = vmatpush1.msra.mxu0 0.0
  %258 = vmatprep.subr.mxu0 0.0
  %259 = vmatpush1.msra.mxu0 0.0
  %260 = vmatprep.subr.mxu0 0.0
  %261 = vmatpush1.msra.mxu0 0.0
  %262 = vmatprep.subr.mxu0 0.0
  %263 = vmatpush1.msra.mxu0 0.0
  %264 = vmatprep.subr.mxu0 0.0
  %265 = vmatpush1.msra.mxu0 0.0
  %266 = vmatprep.subr.mxu0 0.0
  %267 = vmatpush1.msra.mxu0 0.0
  %268 = vmatprep.subr.mxu0 0.0
  %269 = vmatpush1.msra.mxu0 0.0
  %270 = vmatprep.subr.mxu0 0.0
  %271 = vmatpush1.msra.mxu0 0.0
  %272 = vmatprep.subr.mxu0 0.0
  %273 = vmatpush1.msra.mxu0 0.0
  %274 = vmatprep.mubr.f32.mxu0 %v55
  %275 = vmatmul.mubr.f32.gmra.mrb[0].mxu0 %v17
  %v276 = vpop.f32.mrb[0].mxu0
  %v277 = vadd.f32 0.0, %v276
  %v278 = vpop.f32.mrb[0].mxu0
  %279 = vmatprep.mubr.f32.mxu0 %v58
  %280 = vmatmul.mubr.f32.gmra.mrb[0].mxu0 %v19
  %v281 = vpop.f32.mrb[0].mxu0
  %v282 = vadd.f32 0.0, %v281
  %v283 = vpop.f32.mrb[0].mxu0
  %284 = vmatprep.mubr.f32.mxu0 %v61
  %285 = vmatmul.mubr.f32.gmra.mrb[0].mxu0 %v21
  %v286 = vpop.f32.mrb[0].mxu0
  %v287 = vadd.f32 0.0, %v286
  %v288 = vpop.f32.mrb[0].mxu0
  %289 = vmatprep.mubr.f32.mxu0 %v64
  %290 = vmatmul.mubr.f32.gmra.mrb[0].mxu0 %v23
  %v291 = vpop.f32.mrb[0].mxu0
  %v292 = vadd.f32 0.0, %v291
  %v293 = vpop.f32.mrb[0].mxu0
  %294 = vmatprep.mubr.f32.mxu0 %v67
  %295 = vmatmul.mubr.f32.gmra.mrb[0].mxu0 %v25
  %v296 = vpop.f32.mrb[0].mxu0
  %v297 = vadd.f32 0.0, %v296
  %v298 = vpop.f32.mrb[0].mxu0
  %299 = vmatprep.mubr.f32.mxu0 %v70
  %300 = vmatmul.mubr.f32.gmra.mrb[0].mxu0 %v27
  %v301 = vpop.f32.mrb[0].mxu0
  %v302 = vadd.f32 0.0, %v301
  %v303 = vpop.f32.mrb[0].mxu0
  %304 = vmatprep.mubr.f32.mxu0 %v73
  %305 = vmatmul.mubr.f32.gmra.mrb[0].mxu0 %v29
  %v306 = vpop.f32.mrb[0].mxu0
  %v307 = vadd.f32 0.0, %v306
  %v308 = vpop.f32.mrb[0].mxu0
  %309 = vmatprep.mubr.f32.mxu0 %v76
  %310 = vmatmul.mubr.f32.gmra.mrb[0].mxu0 %v31
  %v311 = vpop.f32.mrb[0].mxu0
  %v312 = vadd.f32 0.0, %v311
  %v313 = vpop.f32.mrb[0].mxu0
  %314 = vmatprep.mubr.f32.mxu0 %v79
  %315 = vmatmul.mubr.f32.gmra.mrb[0].mxu0 %v33
  %v316 = vpop.f32.mrb[0].mxu0
  %v317 = vadd.f32 0.0, %v316
  %v318 = vpop.f32.mrb[0].mxu0
  %319 = vdwg.mxu0
  %v320 = vrot.slane %v148, 7
  %v321 = vrot.slane %v153, 7
  %v322 = vrot.slane %v158, 7
  %v323 = vrot.slane %v163, 7
  %v324 = vrot.slane %v168, 7
  %v325 = vrot.slane %v173, 7
  %v326 = vrot.slane %v178, 7
  %v327 = vrot.slane %v183, 7
  %v328 = vrot.slane %v188, 7
  %v329 = vlaneseq
  %v330 = vshrl.u32 %v329, 7
  %vm331 = vcmp.lt.s32.totalorder %v330, 1
  %v332 = vsel %vm331, %v327, %v328
  %v333 = vsel %vm331, %v326, %v327
  %v334 = vsel %vm331, %v325, %v326
  %v335 = vsel %vm331, %v324, %v325
  %v336 = vsel %vm331, %v323, %v324
  %v337 = vsel %vm331, %v322, %v323
  %v338 = vsel %vm331, %v321, %v322
  %v339 = vsel %vm331, %v320, %v321
  %v340 = vsel %vm331, %v328, %v320
  %v341 = vadd.f32 %v340, %v277
  %v342 = vadd.f32 %v339, %v282
  %v343 = vadd.f32 %v338, %v287
  %v344 = vadd.f32 %v337, %v292
  %v345 = vadd.f32 %v336, %v297
  %v346 = vadd.f32 %v335, %v302
  %v347 = vadd.f32 %v334, %v307
  %v348 = vadd.f32 %v333, %v312
  %v349 = vadd.f32 %v332, %v317
  %v350 = vld [vmem:[%s2] sm:$0x1]
  %v352 = vlaneseq
  %v353 = vshrl.u32 %v352, 7
  %v354 = vsub.s32 0, %v353
  %v355 = vrot.slane %v350, %v354
  %v357 = vmul.f32 %v341, %v355
  %v358 = vmul.f32 %v342, %v355
  %v359 = vmul.f32 %v343, %v355
  %v360 = vmul.f32 %v344, %v355
  %v361 = vmul.f32 %v345, %v355
  %v362 = vmul.f32 %v346, %v355
  %v363 = vmul.f32 %v347, %v355
  %v364 = vmul.f32 %v348, %v355
  %v365 = vmul.f32 %v349, %v355
  %v366 = vld [vmem:[%s3] sm:$0x1]
  %v368 = vlaneseq
  %v369 = vshrl.u32 %v368, 7
  %v370 = vsub.s32 0, %v369
  %v371 = vrot.slane %v366, %v370
  %v373 = vadd.f32 %v357, %v371
  %v374 = vadd.f32 %v358, %v371
  %v375 = vadd.f32 %v359, %v371
  %v376 = vadd.f32 %v360, %v371
  %v377 = vadd.f32 %v361, %v371
  %v378 = vadd.f32 %v362, %v371
  %v379 = vadd.f32 %v363, %v371
  %v380 = vadd.f32 %v364, %v371
  %v381 = vadd.f32 %v365, %v371
  %v382 = vmax.f32 %v373, 0.0
  %v383 = vmax.f32 %v374, 0.0
  %v384 = vmax.f32 %v375, 0.0
  %v385 = vmax.f32 %v376, 0.0
  %v386 = vmax.f32 %v377, 0.0
  %v387 = vmax.f32 %v378, 0.0
  %v388 = vmax.f32 %v379, 0.0
  %v389 = vmax.f32 %v380, 0.0
  %v390 = vmax.f32 %v381, 0.0
  %391 = vst [vmem:[%s4] sm:$0xff] %v382
  %392 = vst [vmem:[%s4 + $0x8] sm:$0xff] %v383
  %393 = vst [vmem:[%s4 + $0x10] sm:$0xff] %v384
  %394 = vst [vmem:[%s4 + $0x18] sm:$0xff] %v385
  %395 = vst [vmem:[%s4 + $0x20] sm:$0xff] %v386
  %396 = vst [vmem:[%s4 + $0x28] sm:$0xff] %v387
  %397 = vst [vmem:[%s4 + $0x30] sm:$0xff] %v388
  %398 = vst [vmem:[%s4 + $0x38] sm:$0xff] %v389
  %399 = vst [vmem:[%s4 + $0x40] sm:$0xff] %v390
  // Predicated region
  $region18: #{conv_devide_h_forward.1} parent=0 // pred_check
    _
  $region19: #{conv_devide_h_forward.1} parent=0 // pred_check_branch
    %401 = sbr.rel (0) target = $region21
  $region20: #{conv_devide_h_forward.1} parent=0 // pred_region
    _
  $region21: #{conv_devide_h_forward.1} parent=0 // pred_fallthru
    _
  // Predicated region
  $region22: #{conv_devide_h_forward.1} parent=0 // pred_check
    _
  $region23: #{conv_devide_h_forward.1} parent=0 // pred_check_branch
    %403 = sbr.rel (0) target = $region25
  $region24: #{conv_devide_h_forward.1} parent=0 // pred_region
    _
  $region25: #{conv_devide_h_forward.1} parent=0 // pred_fallthru
    _

</llo_original>
